<compile_context>
chip_gen: v7x
topology: tpu7x:2x2x1
jax: 0.10.0
libtpu: 0.0.40
codegen_flags: <defaults>
</compile_context>

<pallas_src>
import functools

import jax
import jax.numpy as jnp
from jax import lax
from jax.experimental import pallas as pl
from jax.experimental.pallas import tpu as pltpu

BN_EPS = 1e-5  # torch.nn.BatchNorm1d default eps


def _round_up(x: int, m: int) -> int:
    return (x + m - 1) // m * m


def _vmem_capacity_bytes() -> int:
    """Physical VMEM of the attached TPU generation (conservative fallback)."""
    try:
        info = pltpu.get_tpu_info()
        for name in ("vmem_capacity_bytes", "vmem_bytes", "vmem_size_bytes"):
            v = getattr(info, name, None)
            if v:
                return int(v)
    except Exception:
        pass
    return 64 * 1024 * 1024  # v7x physical VMEM (smallest of v5e/v6e/v7x)


# ---------------------------------------------------------------------------
# Kernel 1: tiled global-average-pool over the flattened spatial axis.
#   x2  : (BC, HW)  rows = batch*channels, lanes = H*W  (unpadded, any dtype)
#   out : (BC, 1)   per-row mean
# Lane-dense accumulation into a (row_tile, 128) f32 scratch; the cross-lane
# reduce, 1/HW scale and narrow store happen only at the last reduction step.
# Ragged tail lanes (HW not a multiple of 128/hw_tile) are masked in-kernel;
# ragged tail rows only produce garbage in rows that are never written back.
# ---------------------------------------------------------------------------
def _pool_mean_kernel(x_ref, out_ref, acc_ref, *, hw, hw_tile, inv_hw):
    k = pl.program_id(1)
    nk = pl.num_programs(1)

    @pl.when(k == 0)
    def _init():
        acc_ref[...] = jnp.zeros_like(acc_ref)

    n_chunks = hw_tile // 128
    n_steps = -(-hw // hw_tile)                 # static cdiv
    last_valid = hw - (n_steps - 1) * hw_tile   # valid lanes in last k step
    full_tail = last_valid // 128
    rem = last_valid % 128

    def _accumulate(n_full, tail_rem):
        # Pure VPU adds over 128-wide chunks of the resident VMEM block
        # (the astype is a no-op for f32 input; f32 accumulation either way).
        for c in range(n_full):
            acc_ref[...] += x_ref[:, c * 128:(c + 1) * 128].astype(jnp.float32)
        if tail_rem:
            chunk = x_ref[:, n_full * 128:(n_full + 1) * 128].astype(jnp.float32)
            col = lax.broadcasted_iota(jnp.int32, chunk.shape, 1)
            # OOB lanes of the last block hold unspecified data -> select 0.
            acc_ref[...] += jnp.where(col < tail_rem, chunk, 0.0)

    if last_valid == hw_tile:
        _accumulate(n_chunks, 0)                # hw divides evenly: no masking
    else:
        @pl.when(k < nk - 1)
        def _body():
            _accumulate(n_chunks, 0)

        @pl.when(k == nk - 1)
        def _tail():
            _accumulate(full_tail, rem)

    @pl.when(k == nk - 1)
    def _finalize():
        out_ref[...] = (jnp.sum(acc_ref[...], axis=-1, keepdims=True)
                        * inv_hw).astype(out_ref.dtype)


# ---------------------------------------------------------------------------
# Kernel 2: dense tail (single shot; all operands lane-dense / 128-padded).
#   rep = relu(pooled @ we + be)               # encoder stand-in Linear
#   h   = relu(BN_train(rep @ w1 + b1))        # projector hidden
#   out = h @ w2 + b2                          # projector output
# Row dim is the true batch B (never padded) so BN statistics stay exact.
# ---------------------------------------------------------------------------
def _tail_kernel(pooled_ref, we_ref, be_ref, w1_ref, b1_ref,
                 gamma_ref, beta_ref, w2_ref, b2_ref, out_ref):
    rep = jnp.dot(pooled_ref[...], we_ref[...],
                  preferred_element_type=jnp.float32) + be_ref[...]
    rep = jnp.maximum(rep, 0.0)

    h = jnp.dot(rep, w1_ref[...],
                preferred_element_type=jnp.float32) + b1_ref[...]
    mean = jnp.mean(h, axis=0, keepdims=True)              # BN train-mode stats
    var = jnp.mean(jnp.square(h - mean), axis=0, keepdims=True)  # biased var
    h = (h - mean) * lax.rsqrt(var + BN_EPS)
    h = h * gamma_ref[...] + beta_ref[...]
    h = jnp.maximum(h, 0.0)

    out_ref[...] = jnp.dot(h, w2_ref[...],
                           preferred_element_type=jnp.float32) + b2_ref[...]
    # TODO(synk): BatchNorm1d running_mean/var buffer updates (training
    #             bookkeeping) are not part of the functional forward output.


def net_wrapper_forward(x, params, *, row_tile=None, hw_tile=None):
    """x: (B, C, H, W) NCHW (f32, or bf16 if the producer already emits bf16).
    Returns (B, projection_size) float32."""
    we, be, w1, b1, gamma, beta, w2, b2 = params
    B, C, H, W = x.shape
    HW = H * W
    BC = B * C
    Hf = we.shape[1]
    PH = w1.shape[1]
    P = w2.shape[1]
    itemsize = jnp.dtype(x.dtype).itemsize

    # ------------- generation-aware VMEM budget & tile geometry -------------
    vmem_cap = _vmem_capacity_bytes()                   # 64 MiB v7x, 128 MiB v5e/v6e
    vmem_limit = min(vmem_cap * 3 // 4, 96 * 1024 * 1024)
    tile_budget = vmem_limit // 3                       # x is double-buffered

    if row_tile is None:
        if BC % 8 == 0 and BC >= 16:
            # >= 2 row tiles so the "parallel" axis can shard across v7x's 2 TCs.
            row_tile = min(512, _round_up(pl.cdiv(BC, 2), 8))
        elif BC > 512:
            row_tile = 512
        else:
            row_tile = BC                               # single full-dim block
    else:
        row_tile = max(1, min(row_tile, BC))
        row_tile = max(8, row_tile // 8 * 8) if BC >= 8 else BC

    if hw_tile is None:
        cap = max(128, (tile_budget // max(1, row_tile * itemsize)) // 128 * 128)
        hw_tile = min(_round_up(HW, 128), cap, 8192)    # big tiles; bounded unroll
    else:
        hw_tile = min(_round_up(max(hw_tile, 1), 128), _round_up(HW, 128))

    grid_pool = (pl.cdiv(BC, row_tile), pl.cdiv(HW, hw_tile))

    # Free contiguous reshape only — no pad, no astype (review: avoid staging).
    x2 = x.reshape(BC, HW)

    pooled = pl.pallas_call(
        functools.partial(_pool_mean_kernel,
                          hw=HW, hw_tile=hw_tile, inv_hw=1.0 / HW),
        out_shape=jax.ShapeDtypeStruct((BC, 1), jnp.float32),
        grid=grid_pool,
        in_specs=[pl.BlockSpec((row_tile, hw_tile), lambda i, k: (i, k))],
        out_specs=pl.BlockSpec((row_tile, 1), lambda i, k: (i, 0)),
        scratch_shapes=[pltpu.VMEM((row_tile, 128), jnp.float32)],
        compiler_params=pltpu.CompilerParams(
            dimension_semantics=("parallel", "arbitrary"),
            vmem_limit_bytes=vmem_limit),
        cost_estimate=pl.CostEstimate(
            flops=BC * HW, transcendentals=0,
            bytes_accessed=BC * HW * itemsize + BC * 4),
    )(x2)
    # NOTE: default double-buffering suffices at these tile sizes; only add
    # pipeline_mode=pl.Buffered(3) if a trace still shows exposed DMA.

    # ------------- dense tail: tiny lane-dense single-shot kernel -----------
    f32 = jnp.float32
    Cp = _round_up(C, 128)
    Hfp = _round_up(Hf, 128)
    PHp = _round_up(PH, 128)
    Pp = _round_up(P, 128)

    # pooled is a few KB: reshape/pad in the wrapper is free (review).
    pooled_bc = jnp.pad(pooled.reshape(B, C).astype(f32), ((0, 0), (0, Cp - C)))
    we_p = jnp.pad(we.astype(f32), ((0, Cp - C), (0, Hfp - Hf)))
    be_p = jnp.pad(be.astype(f32).reshape(1, Hf), ((0, 0), (0, Hfp - Hf)))
    w1_p = jnp.pad(w1.astype(f32), ((0, Hfp - Hf), (0, PHp - PH)))
    b1_p = jnp.pad(b1.astype(f32).reshape(1, PH), ((0, 0), (0, PHp - PH)))
    g_p = jnp.pad(gamma.astype(f32).reshape(1, PH), ((0, 0), (0, PHp - PH)))
    bt_p = jnp.pad(beta.astype(f32).reshape(1, PH), ((0, 0), (0, PHp - PH)))
    w2_p = jnp.pad(w2.astype(f32), ((0, PHp - PH), (0, Pp - P)))
    b2_p = jnp.pad(b2.astype(f32).reshape(1, P), ((0, 0), (0, Pp - P)))

    tail_inputs = (pooled_bc, we_p, be_p, w1_p, b1_p, g_p, bt_p, w2_p, b2_p)

    def full_spec(shape):
        n = len(shape)
        return pl.BlockSpec(shape, lambda *_, _n=n: (0,) * _n)

    tail_flops = 2 * B * (Cp * Hfp + Hfp * PHp + PHp * Pp) + 12 * B * PHp
    tail_bytes = 4 * (B * Cp + Cp * Hfp + Hfp + Hfp * PHp + 3 * PHp
                      + PHp * Pp + Pp + B * Pp)

    out_p = pl.pallas_call(
        _tail_kernel,
        out_shape=jax.ShapeDtypeStruct((B, Pp), jnp.float32),
        grid=(1,),
        in_specs=[full_spec(a.shape) for a in tail_inputs],
        out_specs=full_spec((B, Pp)),
        compiler_params=pltpu.CompilerParams(
            dimension_semantics=("arbitrary",),
            vmem_limit_bytes=32 * 1024 * 1024),
        cost_estimate=pl.CostEstimate(
            flops=tail_flops, transcendentals=PHp, bytes_accessed=tail_bytes),
    )(*tail_inputs)

    return out_p[:, :P]


def init_params(key, in_channels, hidden_features,
                projection_hidden_size, projection_size):
    """Deterministic synthetic parameters (shapes from the module __init__)."""
    ks = jax.random.split(key, 6)
    we = 0.1 * jax.random.normal(ks[0], (in_channels, hidden_features), jnp.float32)
    be = jnp.zeros((1, hidden_features), jnp.float32)
    w1 = 0.1 * jax.random.normal(ks[1], (hidden_features, projection_hidden_size), jnp.float32)
    b1 = 0.01 * jax.random.normal(ks[2], (1, projection_hidden_size), jnp.float32)
    gamma = jnp.ones((1, projection_hidden_size), jnp.float32)   # BN weight
    beta = jnp.zeros((1, projection_hidden_size), jnp.float32)   # BN bias
    w2 = 0.1 * jax.random.normal(ks[3], (projection_hidden_size, projection_size), jnp.float32)
    b2 = 0.01 * jax.random.normal(ks[4], (1, projection_size), jnp.float32)
    return (we, be, w1, b1, gamma, beta, w2, b2)


def reference_forward(x, params):
    """Pure-JAX reference mirroring the PyTorch semantics (BN in train mode)."""
    we, be, w1, b1, gamma, beta, w2, b2 = params
    B, C, H, W = x.shape
    pooled = jnp.mean(x.reshape(B, C, H * W), axis=-1)
    rep = jnp.maximum(pooled @ we + be, 0.0)
    h = rep @ w1 + b1
    mean = jnp.mean(h, axis=0, keepdims=True)
    var = jnp.mean((h - mean) ** 2, axis=0, keepdims=True)
    h = (h - mean) / jnp.sqrt(var + BN_EPS)
    h = jnp.maximum(h * gamma + beta, 0.0)
    return h @ w2 + b2


if __name__ == "__main__":
    # Small shapes consistent with the module's forward (x: audio "image", NCHW).
    B, C, H, W = 8, 4, 16, 16
    hidden_features = 32
    projection_hidden_size = 64
    projection_size = 32

    key = jax.random.PRNGKey(0)
    kx, kp, kx2, kp2 = jax.random.split(key, 4)
    x = jax.random.normal(kx, (B, C, H, W), jnp.float32)
    params = init_params(kp, C, hidden_features,
                         projection_hidden_size, projection_size)
    ref = reference_forward(x, params)

    fwd = jax.jit(net_wrapper_forward, static_argnames=("row_tile", "hw_tile"))

    # Default tiles (single reduction step, 2 parallel row tiles).
    out = jax.block_until_ready(fwd(x, params))
    assert out.shape == (B, projection_size)
    assert jnp.allclose(out, ref, atol=1e-4, rtol=1e-3), "default-tile mismatch"

    # Forced multi-step reduction: exercises init / accumulate / finalize
    # across the "arbitrary" hw grid axis with the resident scratch.
    out2 = jax.block_until_ready(fwd(x, params, hw_tile=128))
    assert jnp.allclose(out2, ref, atol=1e-4, rtol=1e-3), "multi-step mismatch"

    # Ragged shapes: HW not a multiple of 128 and B*C not a multiple of 8.
    # Exercises the in-kernel tail-lane masking (no wrapper-side padding of x).
    B2, C2, H2, W2 = 3, 5, 10, 10
    x_r = jax.random.normal(kx2, (B2, C2, H2, W2), jnp.float32)
    params_r = init_params(kp2, C2, 16, 32, 24)
    ref_r = reference_forward(x_r, params_r)
    out_r = jax.block_until_ready(fwd(x_r, params_r))
    assert out_r.shape == (B2, 24)
    assert jnp.allclose(out_r, ref_r, atol=1e-4, rtol=1e-3), "ragged mismatch"

    print("KERNEL_OK")
</pallas_src>

<mosaic_0001>
module attributes {stable_mosaic.version = 11 : i64} {
  func.func @_pool_mean_kernel(%arg0: i32, %arg1: i32, %arg2: memref<16x256xf32, #tpu.memory_space<vmem>>, %arg3: memref<16x1xf32, #tpu.memory_space<vmem>>, %arg4: memref<16x128xf32, #tpu.memory_space<vmem>>) attributes {dimension_semantics = [#tpu.dimension_semantics<parallel>, #tpu.dimension_semantics<arbitrary>], iteration_bounds = array<i64: 2, 1>, scalar_prefetch = 0 : i64, scratch_operands = 1 : i64, tpu.core_type = #tpu.core_type<tc>, window_params = [{transform_indices = @transform_0, window_bounds = array<i64: 16, 256>}, {transform_indices = @transform_1, window_bounds = array<i64: 16, 1>}]} {
    %c0_i32 = arith.constant 0 : i32
    %0 = arith.cmpi eq, %arg1, %c0_i32 : i32
    %1 = arith.extui %0 : i1 to i32
    %c0_i32_0 = arith.constant 0 : i32
    %2 = arith.cmpi ne, %1, %c0_i32_0 : i32
    scf.if %2 {
      %cst = arith.constant 0.000000e+00 : f32
      %14 = vector.broadcast %cst : f32 to vector<16x128xf32>
      %c0_13 = arith.constant 0 : index
      %c0_14 = arith.constant 0 : index
      %15 = vector.load %arg4[%c0_13, %c0_14] : memref<16x128xf32, #tpu.memory_space<vmem>>, vector<16x128xf32>
      tpu.vector_store %arg4[%c0_13, %c0_14], %14 {strides = array<i32>} : memref<16x128xf32, #tpu.memory_space<vmem>>, vector<16x128xf32>,
    } else {
    }
    %c0 = arith.constant 0 : index
    %c0_1 = arith.constant 0 : index
    %3 = vector.load %arg4[%c0, %c0_1] : memref<16x128xf32, #tpu.memory_space<vmem>>, vector<16x128xf32>
    %c0_2 = arith.constant 0 : index
    %c0_3 = arith.constant 0 : index
    %4 = vector.load %arg2[%c0_2, %c0_3] : memref<16x256xf32, #tpu.memory_space<vmem>>, vector<16x128xf32>
    %5 = arith.addf %3, %4 : vector<16x128xf32>
    %c0_4 = arith.constant 0 : index
    %c0_5 = arith.constant 0 : index
    %6 = vector.load %arg4[%c0_4, %c0_5] : memref<16x128xf32, #tpu.memory_space<vmem>>, vector<16x128xf32>
    tpu.vector_store %arg4[%c0_4, %c0_5], %5 {strides = array<i32>} : memref<16x128xf32, #tpu.memory_space<vmem>>, vector<16x128xf32>,
    %c0_6 = arith.constant 0 : index
    %c0_7 = arith.constant 0 : index
    %7 = vector.load %arg4[%c0_6, %c0_7] : memref<16x128xf32, #tpu.memory_space<vmem>>, vector<16x128xf32>
    %c0_8 = arith.constant 0 : index
    %c128 = arith.constant 128 : index
    %8 = vector.load %arg2[%c0_8, %c128] : memref<16x256xf32, #tpu.memory_space<vmem>>, vector<16x128xf32>
    %9 = arith.addf %7, %8 : vector<16x128xf32>
    %c0_9 = arith.constant 0 : index
    %c0_10 = arith.constant 0 : index
    %10 = vector.load %arg4[%c0_9, %c0_10] : memref<16x128xf32, #tpu.memory_space<vmem>>, vector<16x128xf32>
    tpu.vector_store %arg4[%c0_9, %c0_10], %9 {strides = array<i32>} : memref<16x128xf32, #tpu.memory_space<vmem>>, vector<16x128xf32>,
    %c0_i32_11 = arith.constant 0 : i32
    %11 = arith.cmpi eq, %arg1, %c0_i32_11 : i32
    %12 = arith.extui %11 : i1 to i32
    %c0_i32_12 = arith.constant 0 : i32
    %13 = arith.cmpi ne, %12, %c0_i32_12 : i32
    scf.if %13 {
      %c0_13 = arith.constant 0 : index
      %c0_14 = arith.constant 0 : index
      %14 = vector.load %arg4[%c0_13, %c0_14] : memref<16x128xf32, #tpu.memory_space<vmem>>, vector<16x128xf32>
      %cst = arith.constant dense<0.000000e+00> : vector<16xf32>
      %15 = vector.multi_reduction <add>, %14, %cst [1] : vector<16x128xf32> to vector<16xf32>
      %16 = vector.shape_cast %15 : vector<16xf32> to vector<16x1xf32>
      %cst_15 = arith.constant 3.906250e-03 : f32
      %17 = vector.broadcast %cst_15 : f32 to vector<16x1xf32>
      %18 = arith.mulf %16, %17 : vector<16x1xf32>
      %c0_16 = arith.constant 0 : index
      %c0_17 = arith.constant 0 : index
      %19 = vector.load %arg3[%c0_16, %c0_17] : memref<16x1xf32, #tpu.memory_space<vmem>>, vector<16x1xf32>
      tpu.vector_store %arg3[%c0_16, %c0_17], %18 {strides = array<i32>} : memref<16x1xf32, #tpu.memory_space<vmem>>, vector<16x1xf32>,
    } else {
    }
    return
  }
  func.func @transform_0(%arg0: i32, %arg1: i32) -> (i32, i32) {
    %c0_i32 = arith.constant 0 : i32
    return %arg0, %arg1 : i32, i32
  }
  func.func @transform_1(%arg0: i32, %arg1: i32) -> (i32, i32) {
    %c0_i32 = arith.constant 0 : i32
    %c0_i32_0 = arith.constant 0 : i32
    return %arg0, %c0_i32 : i32, i32
  }
}

module attributes {stable_mosaic.version = 11 : i64} {
  func.func @_tail_kernel(%arg0: i32, %arg1: memref<8x128xf32, #tpu.memory_space<vmem>>, %arg2: memref<128x128xf32, #tpu.memory_space<vmem>>, %arg3: memref<1x128xf32, #tpu.memory_space<vmem>>, %arg4: memref<128x128xf32, #tpu.memory_space<vmem>>, %arg5: memref<1x128xf32, #tpu.memory_space<vmem>>, %arg6: memref<1x128xf32, #tpu.memory_space<vmem>>, %arg7: memref<1x128xf32, #tpu.memory_space<vmem>>, %arg8: memref<128x128xf32, #tpu.memory_space<vmem>>, %arg9: memref<1x128xf32, #tpu.memory_space<vmem>>, %arg10: memref<8x128xf32, #tpu.memory_space<vmem>>) attributes {dimension_semantics = [#tpu.dimension_semantics<arbitrary>], iteration_bounds = array<i64: 1>, scalar_prefetch = 0 : i64, scratch_operands = 0 : i64, tpu.core_type = #tpu.core_type<tc>, window_params = [{pipeline_mode = #tpu.pipeline_mode<synchronous>, transform_indices = @transform_0, window_bounds = array<i64: 8, 128>}, {pipeline_mode = #tpu.pipeline_mode<synchronous>, transform_indices = @transform_1, window_bounds = array<i64: 128, 128>}, {pipeline_mode = #tpu.pipeline_mode<synchronous>, transform_indices = @transform_2, window_bounds = array<i64: 1, 128>}, {pipeline_mode = #tpu.pipeline_mode<synchronous>, transform_indices = @transform_3, window_bounds = array<i64: 128, 128>}, {pipeline_mode = #tpu.pipeline_mode<synchronous>, transform_indices = @transform_4, window_bounds = array<i64: 1, 128>}, {pipeline_mode = #tpu.pipeline_mode<synchronous>, transform_indices = @transform_5, window_bounds = array<i64: 1, 128>}, {pipeline_mode = #tpu.pipeline_mode<synchronous>, transform_indices = @transform_6, window_bounds = array<i64: 1, 128>}, {pipeline_mode = #tpu.pipeline_mode<synchronous>, transform_indices = @transform_7, window_bounds = array<i64: 128, 128>}, {pipeline_mode = #tpu.pipeline_mode<synchronous>, transform_indices = @transform_8, window_bounds = array<i64: 1, 128>}, {pipeline_mode = #tpu.pipeline_mode<synchronous>, transform_indices = @transform_9, window_bounds = array<i64: 8, 128>}]} {
    %c0 = arith.constant 0 : index
    %c0_0 = arith.constant 0 : index
    %0 = vector.load %arg1[%c0, %c0_0] : memref<8x128xf32, #tpu.memory_space<vmem>>, vector<8x128xf32>
    %c0_1 = arith.constant 0 : index
    %c0_2 = arith.constant 0 : index
    %1 = vector.load %arg2[%c0_1, %c0_2] : memref<128x128xf32, #tpu.memory_space<vmem>>, vector<128x128xf32>
    %cst = arith.constant dense<0.000000e+00> : vector<8x128xf32>
    %2 = tpu.matmul %0, %1, %cst {dimension_numbers = #tpu.dot_dimension_numbers<[1], [0], [0], [1], [0, 0, 1, 1], [], []>} : vector<8x128xf32>, vector<128x128xf32>, vector<8x128xf32> -> vector<8x128xf32>
    %c0_3 = arith.constant 0 : index
    %c0_4 = arith.constant 0 : index
    %3 = vector.load %arg3[%c0_3, %c0_4] : memref<1x128xf32, #tpu.memory_space<vmem>>, vector<1x128xf32>
    %4 = vector.broadcast %3 : vector<1x128xf32> to vector<8x128xf32>
    %5 = arith.addf %2, %4 : vector<8x128xf32>
    %cst_5 = arith.constant 0.000000e+00 : f32
    %6 = vector.broadcast %cst_5 : f32 to vector<8x128xf32>
    %7 = arith.maximumf %5, %6 : vector<8x128xf32>
    %c0_6 = arith.constant 0 : index
    %c0_7 = arith.constant 0 : index
    %8 = vector.load %arg4[%c0_6, %c0_7] : memref<128x128xf32, #tpu.memory_space<vmem>>, vector<128x128xf32>
    %cst_8 = arith.constant dense<0.000000e+00> : vector<8x128xf32>
    %9 = tpu.matmul %7, %8, %cst_8 {dimension_numbers = #tpu.dot_dimension_numbers<[1], [0], [0], [1], [0, 0, 1, 1], [], []>} : vector<8x128xf32>, vector<128x128xf32>, vector<8x128xf32> -> vector<8x128xf32>
    %c0_9 = arith.constant 0 : index
    %c0_10 = arith.constant 0 : index
    %10 = vector.load %arg5[%c0_9, %c0_10] : memref<1x128xf32, #tpu.memory_space<vmem>>, vector<1x128xf32>
    %11 = vector.broadcast %10 : vector<1x128xf32> to vector<8x128xf32>
    %12 = arith.addf %9, %11 : vector<8x128xf32>
    %cst_11 = arith.constant dense<0.000000e+00> : vector<128xf32>
    %13 = vector.multi_reduction <add>, %12, %cst_11 [0] : vector<8x128xf32> to vector<128xf32>
    %14 = vector.shape_cast %13 : vector<128xf32> to vector<1x128xf32>
    %cst_12 = arith.constant 8.000000e+00 : f32
    %15 = vector.broadcast %cst_12 : f32 to vector<1x128xf32>
    %16 = arith.divf %14, %15 : vector<1x128xf32>
    %17 = vector.broadcast %16 : vector<1x128xf32> to vector<8x128xf32>
    %18 = arith.subf %12, %17 : vector<8x128xf32>
    %19 = arith.mulf %18, %18 : vector<8x128xf32>
    %cst_13 = arith.constant dense<0.000000e+00> : vector<128xf32>
    %20 = vector.multi_reduction <add>, %19, %cst_13 [0] : vector<8x128xf32> to vector<128xf32>
    %21 = vector.shape_cast %20 : vector<128xf32> to vector<1x128xf32>
    %cst_14 = arith.constant 8.000000e+00 : f32
    %22 = vector.broadcast %cst_14 : f32 to vector<1x128xf32>
    %23 = arith.divf %21, %22 : vector<1x128xf32>
    %24 = vector.broadcast %16 : vector<1x128xf32> to vector<8x128xf32>
    %25 = arith.subf %12, %24 : vector<8x128xf32>
    %cst_15 = arith.constant 9.99999974E-6 : f32
    %26 = vector.broadcast %cst_15 : f32 to vector<1x128xf32>
    %27 = arith.addf %23, %26 : vector<1x128xf32>
    %28 = math.rsqrt %27 : vector<1x128xf32>
    %29 = vector.broadcast %28 : vector<1x128xf32> to vector<8x128xf32>
    %30 = arith.mulf %25, %29 : vector<8x128xf32>
    %c0_16 = arith.constant 0 : index
    %c0_17 = arith.constant 0 : index
    %31 = vector.load %arg6[%c0_16, %c0_17] : memref<1x128xf32, #tpu.memory_space<vmem>>, vector<1x128xf32>
    %32 = vector.broadcast %31 : vector<1x128xf32> to vector<8x128xf32>
    %33 = arith.mulf %30, %32 : vector<8x128xf32>
    %c0_18 = arith.constant 0 : index
    %c0_19 = arith.constant 0 : index
    %34 = vector.load %arg7[%c0_18, %c0_19] : memref<1x128xf32, #tpu.memory_space<vmem>>, vector<1x128xf32>
    %35 = vector.broadcast %34 : vector<1x128xf32> to vector<8x128xf32>
    %36 = arith.addf %33, %35 : vector<8x128xf32>
    %cst_20 = arith.constant 0.000000e+00 : f32
    %37 = vector.broadcast %cst_20 : f32 to vector<8x128xf32>
    %38 = arith.maximumf %36, %37 : vector<8x128xf32>
    %c0_21 = arith.constant 0 : index
    %c0_22 = arith.constant 0 : index
    %39 = vector.load %arg8[%c0_21, %c0_22] : memref<128x128xf32, #tpu.memory_space<vmem>>, vector<128x128xf32>
    %cst_23 = arith.constant dense<0.000000e+00> : vector<8x128xf32>
    %40 = tpu.matmul %38, %39, %cst_23 {dimension_numbers = #tpu.dot_dimension_numbers<[1], [0], [0], [1], [0, 0, 1, 1], [], []>} : vector<8x128xf32>, vector<128x128xf32>, vector<8x128xf32> -> vector<8x128xf32>
    %c0_24 = arith.constant 0 : index
    %c0_25 = arith.constant 0 : index
    %41 = vector.load %arg9[%c0_24, %c0_25] : memref<1x128xf32, #tpu.memory_space<vmem>>, vector<1x128xf32>
    %42 = vector.broadcast %41 : vector<1x128xf32> to vector<8x128xf32>
    %43 = arith.addf %40, %42 : vector<8x128xf32>
    %c0_26 = arith.constant 0 : index
    %c0_27 = arith.constant 0 : index
    %44 = vector.load %arg10[%c0_26, %c0_27] : memref<8x128xf32, #tpu.memory_space<vmem>>, vector<8x128xf32>
    tpu.vector_store %arg10[%c0_26, %c0_27], %43 {strides = array<i32>} : memref<8x128xf32, #tpu.memory_space<vmem>>, vector<8x128xf32>,
    return
  }
  func.func @transform_0(%arg0: i32) -> (i32, i32) {
    %c0_i32 = arith.constant 0 : i32
    %c0_i32_0 = arith.constant 0 : i32
    %c0_i32_1 = arith.constant 0 : i32
    return %c0_i32, %c0_i32_0 : i32, i32
  }
  func.func @transform_1(%arg0: i32) -> (i32, i32) {
    %c0_i32 = arith.constant 0 : i32
    %c0_i32_0 = arith.constant 0 : i32
    %c0_i32_1 = arith.constant 0 : i32
    return %c0_i32, %c0_i32_0 : i32, i32
  }
  func.func @transform_2(%arg0: i32) -> (i32, i32) {
    %c0_i32 = arith.constant 0 : i32
    %c0_i32_0 = arith.constant 0 : i32
    %c0_i32_1 = arith.constant 0 : i32
    return %c0_i32, %c0_i32_0 : i32, i32
  }
  func.func @transform_3(%arg0: i32) -> (i32, i32) {
    %c0_i32 = arith.constant 0 : i32
    %c0_i32_0 = arith.constant 0 : i32
    %c0_i32_1 = arith.constant 0 : i32
    return %c0_i32, %c0_i32_0 : i32, i32
  }
  func.func @transform_4(%arg0: i32) -> (i32, i32) {
    %c0_i32 = arith.constant 0 : i32
    %c0_i32_0 = arith.constant 0 : i32
    %c0_i32_1 = arith.constant 0 : i32
    return %c0_i32, %c0_i32_0 : i32, i32
  }
  func.func @transform_5(%arg0: i32) -> (i32, i32) {
    %c0_i32 = arith.constant 0 : i32
    %c0_i32_0 = arith.constant 0 : i32
    %c0_i32_1 = arith.constant 0 : i32
    return %c0_i32, %c0_i32_0 : i32, i32
  }
  func.func @transform_6(%arg0: i32) -> (i32, i32) {
    %c0_i32 = arith.constant 0 : i32
    %c0_i32_0 = arith.constant 0 : i32
    %c0_i32_1 = arith.constant 0 : i32
    return %c0_i32, %c0_i32_0 : i32, i32
  }
  func.func @transform_7(%arg0: i32) -> (i32, i32) {
    %c0_i32 = arith.constant 0 : i32
    %c0_i32_0 = arith.constant 0 : i32
    %c0_i32_1 = arith.constant 0 : i32
    return %c0_i32, %c0_i32_0 : i32, i32
  }
  func.func @transform_8(%arg0: i32) -> (i32, i32) {
    %c0_i32 = arith.constant 0 : i32
    %c0_i32_0 = arith.constant 0 : i32
    %c0_i32_1 = arith.constant 0 : i32
    return %c0_i32, %c0_i32_0 : i32, i32
  }
  func.func @transform_9(%arg0: i32) -> (i32, i32) {
    %c0_i32 = arith.constant 0 : i32
    %c0_i32_0 = arith.constant 0 : i32
    %c0_i32_1 = arith.constant 0 : i32
    return %c0_i32, %c0_i32_0 : i32, i32
  }
}

</mosaic_0001>

<llo_original>
// kernel: net_wrapper_forward.2
$region0: #{net_wrapper_forward.2}
  #allocation0 [shape = 'u32[]', space=smem, size = 0x4, offset = 0x4, fixed_abs, tag = 'smem constant byte address 0x4 - core index']
  #allocation1 [shape = 'u32[144,128]{1,0:T(1,128)}', space=vmem, size = 0x12000, scoped, tag = 'internal scratch']
  #allocation2 [shape = 'f32[16,128]{1,0:T(8,128)}', space=vmem, size = 0x2000, scoped, tag = 'scratch operand']
  %s0 = inlined_call_operand.vmem [shape: f32[32,256], index: 0, kind: input, shape index: {}]
  %s1 = inlined_call_operand.vmem [shape: f32[32,1], index: 1, kind: output, shape index: {}]
  %s2 = sld [smem:[#allocation0]]
  $region45: #{net_wrapper_forward.2} parent=0
    _
  %s4 = ssub.s32 1, %s2
  %s5 = scalar_select 0, %s4, %s2
  loop: start=0, step=1, limit=4
  $region2: #{net_wrapper_forward.2} parent=0 // loop_pre_header
    _
  $region3: #{net_wrapper_forward.2} parent=0 // loop_header
    %s7 = sphi 0, %s11
    %p8 = scmp.ge.s32.totalorder %s7, 4
    %s14 = sphi 0, %s26
    %s15 = sphi 0, %s22
    %s16 = sphi 0, %s14
    %s17 = sphi 0, %s15
    %s18 = sphi 0, %s16
    %s19 = sphi 0, %s17
    %s31 = sphi 0, %s33
    %s34 = sphi 0, %s31
    %s35 = sphi 0, %s34
    %s51 = sphi 0, %s35
    %s57 = sphi 0, %s59
    %s60 = sphi 0, %s57
    %s61 = sphi 0, %s60
    %s77 = sphi 0, %s61
  $region4: #{net_wrapper_forward.2} parent=0 // loop_header_branch
    %10 = sbr.rel (%p8) target = $region8
  $region5: #{net_wrapper_forward.2} parent=0 // loop_body
    %s12 = ssub.s32 %s7, 1
    %s13 = ssub.s32 %s7, 2
    %s20 = sadd.s32 1, %s15
    %p21 = scmp.ge.s32.totalorder %s20, 1
    %s22 = scalar_select %p21, 0, %s20
    %s23 = sadd.s32 1, %s14
    %s24 = scalar_select %p21, %s23, %s14
    %p25 = scmp.ge.s32.totalorder %s24, 2
    %s26 = scalar_select %p25, 0, %s24
    %s27 = ssub.s32 %s14, %s26
    %s28 = ssub.s32 %s15, %s22
    %s29 = sor.u32 %s27, %s28
    %p30 = scmp.eq.s32.totalorder %s29, 0
    %s32 = sadd.s32 %s31, 1
    %s33 = scalar_select %p30, %s31, %s32
    %p36 = pneg %p30
    %p37 = scmp.eq.s32.totalorder %s7, 1
    %p38 = por %p36, %p37
    %p39 = scmp.ne.s32.totalorder %s31, %s34
    %p40 = scmp.eq.s32.totalorder %s7, 0
    %p41 = por %p39, %p40
    %p42 = scmp.ne.s32.totalorder %s31, %s34
    %p43 = scmp.eq.s32.totalorder %s12, 1
    %p44 = por %p42, %p43
    %p45 = scmp.ne.s32.totalorder %s34, %s35
    %p46 = scmp.eq.s32.totalorder %s12, 0
    %p47 = por %p45, %p46
    %p48 = scmp.ne.s32.totalorder %s34, %s35
    %p49 = scmp.eq.s32.totalorder %s13, 1
    %p50 = por %p48, %p49
    %p52 = scmp.ne.s32.totalorder %s35, %s51
    %p53 = scmp.eq.s32.totalorder %s13, 0
    %p54 = por %p52, %p53
    %s55 = ssub.s32 %s14, %s26
    %p56 = scmp.eq.s32.totalorder %s55, 0
    %s58 = sadd.s32 %s57, 1
    %s59 = scalar_select %p56, %s57, %s58
    %p62 = pneg %p56
    %p63 = scmp.eq.s32.totalorder %s7, 1
    %p64 = por %p62, %p63
    %p65 = scmp.ne.s32.totalorder %s57, %s60
    %p66 = scmp.eq.s32.totalorder %s7, 0
    %p67 = por %p65, %p66
    %p68 = scmp.ne.s32.totalorder %s57, %s60
    %p69 = scmp.eq.s32.totalorder %s12, 1
    %p70 = por %p68, %p69
    %p71 = scmp.ne.s32.totalorder %s60, %s61
    %p72 = scmp.eq.s32.totalorder %s12, 0
    %p73 = por %p71, %p72
    %p74 = scmp.ne.s32.totalorder %s60, %s61
    %p75 = scmp.eq.s32.totalorder %s13, 1
    %p76 = por %p74, %p75
    %p78 = scmp.ne.s32.totalorder %s61, %s77
    %p79 = scmp.eq.s32.totalorder %s13, 0
    %p80 = por %p78, %p79
    %p81 = scmp.le.s32.totalorder 1, %s7
    %p82 = scmp.lt.s32.totalorder %s7, 3
    %p83 = pnand %p81, %p82
    %p84 = pneg %p83
    // Predicated region
    $region9: #{net_wrapper_forward.2} parent=5 // pred_check
      _
    $region10: #{net_wrapper_forward.2} parent=5 // pred_check_branch
      %86 = sbr.rel (%p83) target = $region12
    $region11: #{net_wrapper_forward.2} parent=5 // pred_region
      %s87 = ssub.s32 %s7, 1
    $region12: #{net_wrapper_forward.2} parent=5 // pred_fallthru
      _
    %p88 = scmp.lt.s32.totalorder %s7, 2
    // Predicated region
    $region13: #{net_wrapper_forward.2} parent=5 // pred_check
      %p89 = pneg %p88
    $region14: #{net_wrapper_forward.2} parent=5 // pred_check_branch
      %91 = sbr.rel (%p89) target = $region16
    $region15: #{net_wrapper_forward.2} parent=5 // pred_region
      // Predicated region
      $region17: #{net_wrapper_forward.2} parent=15 // pred_check
        %p92 = pneg %p41
      $region18: #{net_wrapper_forward.2} parent=15 // pred_check_branch
        %94 = sbr.rel (%p92) target = $region20
      $region19: #{net_wrapper_forward.2} parent=15 // pred_region
        %s95 = smul.u32 2, %s14
        %s96 = smul.u32 2, %s15
        %p97 = scmp.lt.s32.totalorder %s95, 3
        %s98 = scalar_select %p97, %s95, 3
        %p99 = scmp.lt.s32.totalorder %s96, 1
        %s100 = scalar_select %p99, %s96, 1
        %s101 = smul.addr %s98, 2
        %s102 = sadd.s32 %s100, %s101
        %s103 = smul.addr %s102, 8
        %s104 = scalar_lea.vmem %s0, %s103
        %s105 = smul.u32 2, %s14
        %s106 = smul.u32 2, %s15
      $region20: #{net_wrapper_forward.2} parent=15 // pred_fallthru
        _
    $region16: #{net_wrapper_forward.2} parent=5 // pred_fallthru
      _
    %p107 = scmp.le.s32.totalorder 1, %s7
    %p108 = scmp.lt.s32.totalorder %s7, 3
    %p109 = pnand %p107, %p108
    %p110 = pneg %p109
    // Predicated region
    $region21: #{net_wrapper_forward.2} parent=5 // pred_check
      _
    $region22: #{net_wrapper_forward.2} parent=5 // pred_check_branch
      %112 = sbr.rel (%p109) target = $region24
    $region23: #{net_wrapper_forward.2} parent=5 // pred_region
      %s113 = ssub.s32 %s7, 1
      %s114 = smul.u32 2, %s16
      %s115 = smul.u32 2, %s17
      %p116 = scmp.lt.s32.totalorder %s114, 3
      %s117 = scalar_select %p116, %s114, 3
      %p118 = scmp.lt.s32.totalorder %s115, 1
      %s119 = scalar_select %p118, %s115, 1
      %s120 = smul.addr %s117, 2
      %s121 = sadd.s32 %s119, %s120
      %s122 = smul.addr %s121, 8
      %s123 = scalar_lea.vmem %s0, %s122
      %p124 = pneg %p47
      %p125 = pneg %p44
      %p126 = pneg %p73
      %p127 = pneg %p70
      %s128 = smul.u32 2, %s16
      %p129 = scmp.lt.s32.totalorder %s128, 3
      %s130 = scalar_select %p129, %s128, 3
      %s131 = smul.addr %s130, 8
      %s132 = scalar_lea.vmem %s1, %s131
      %s133 = smul.u32 2, %s16
      %s134 = smul.u32 2, %s17
      %p135 = scmp.lt.s32.totalorder %s133, 3
      %s136 = scalar_select %p135, %s133, 3
      %p137 = scmp.lt.s32.totalorder %s134, 1
      %s138 = scalar_select %p137, %s134, 1
      %s139 = smul.addr %s136, 2
      %s140 = sadd.s32 %s138, %s139
      %s141 = smul.addr %s140, 8
      %s142 = scalar_lea.vmem %s0, %s141
      %s143 = smul.u32 2, %s16
      %s144 = smul.u32 2, %s17
      %s145 = smul.u32 2, %s16
      %p146 = scmp.lt.s32.totalorder %s145, 3
      %s147 = scalar_select %p146, %s145, 3
      %s148 = smul.addr %s147, 8
      %s149 = scalar_lea.vmem %s1, %s148
      %s150 = smul.u32 2, %s16
      %p151 = scmp.eq.s32.totalorder %s17, 0
      // Predicated region
      $region25: #{net_wrapper_forward.2} parent=23 // pred_check
        %p152 = pneg %p151
      $region26: #{net_wrapper_forward.2} parent=23 // pred_check_branch
        %154 = sbr.rel (%p152) target = $region28
      $region27: #{net_wrapper_forward.2} parent=23 // pred_region
        %155 = vst [vmem:[#allocation2] sm:$0xff] 0.0
        %156 = vst [vmem:[#allocation2 + $0x8] sm:$0xff] 0.0
      $region28: #{net_wrapper_forward.2} parent=23 // pred_fallthru
        _
      %v157 = vld [vmem:[#allocation2] sm:$0xff]
      %v158 = vld [vmem:[#allocation2 + $0x8] sm:$0xff]
      %v159 = vld [vmem:[%s142] sm:$0xff]
      %v160 = vld [vmem:[%s142 + $0x10] sm:$0xff]
      %v161 = vadd.f32 %v157, %v159
      %v162 = vadd.f32 %v158, %v160
      %163 = vst [vmem:[#allocation2] sm:$0xff] %v161
      %164 = vst [vmem:[#allocation2 + $0x8] sm:$0xff] %v162
      %v165 = vld [vmem:[#allocation2] sm:$0xff]
      %v166 = vld [vmem:[#allocation2 + $0x8] sm:$0xff]
      %v167 = vld [vmem:[%s142 + $0x8] sm:$0xff]
      %v168 = vld [vmem:[%s142 + $0x18] sm:$0xff]
      %v169 = vadd.f32 %v165, %v167
      %v170 = vadd.f32 %v166, %v168
      %171 = vst [vmem:[#allocation2] sm:$0xff] %v169
      %172 = vst [vmem:[#allocation2 + $0x8] sm:$0xff] %v170
      // Predicated region
      $region29: #{net_wrapper_forward.2} parent=23 // pred_check
        %p173 = pneg %p151
      $region30: #{net_wrapper_forward.2} parent=23 // pred_check_branch
        %175 = sbr.rel (%p173) target = $region32
      $region31: #{net_wrapper_forward.2} parent=23 // pred_region
        %v176 = vld [vmem:[#allocation2] sm:$0xff]
        %v177 = vld [vmem:[#allocation2 + $0x8] sm:$0xff]
        %178 = vadd.xlane.f32.xlu0 %v176
        %v179 = vpop.xlane.xlu0 %178
        %180 = vadd.xlane.f32.xlu0 %v177
        %v181 = vpop.xlane.xlu0 %180
        %v182 = vmul.f32 %v179, 0.00390625
        %v183 = vmul.f32 %v181, 0.00390625
        %vm184 = vcmask 7168
        %185 = vst.msk [vmem:[%s149] sm:$0xff] %vm184, %v182
        %186 = vst.msk [vmem:[%s149 + $0x8] sm:$0xff] %vm184, %v183
      $region32: #{net_wrapper_forward.2} parent=23 // pred_fallthru
        _
      %s187 = smul.u32 2, %s16
      %p188 = scmp.lt.s32.totalorder %s187, 3
      %s189 = scalar_select %p188, %s187, 3
      %s190 = smul.addr %s189, 8
      %s191 = scalar_lea.vmem %s1, %s190
      // Predicated region
      $region33: #{net_wrapper_forward.2} parent=23 // pred_check
        %p192 = pneg %p70
      $region34: #{net_wrapper_forward.2} parent=23 // pred_check_branch
        %194 = sbr.rel (%p192) target = $region36
      $region35: #{net_wrapper_forward.2} parent=23 // pred_region
        %s195 = smul.u32 2, %s16
      $region36: #{net_wrapper_forward.2} parent=23 // pred_fallthru
        _
    $region24: #{net_wrapper_forward.2} parent=5 // pred_fallthru
      _
    %p196 = scmp.le.s32.totalorder 2, %s7
    // Predicated region
    $region37: #{net_wrapper_forward.2} parent=5 // pred_check
      %p197 = pneg %p196
    $region38: #{net_wrapper_forward.2} parent=5 // pred_check_branch
      %199 = sbr.rel (%p197) target = $region40
    $region39: #{net_wrapper_forward.2} parent=5 // pred_region
      %s200 = ssub.s32 %s7, 2
      // Predicated region
      $region41: #{net_wrapper_forward.2} parent=39 // pred_check
        %p201 = pneg %p76
      $region42: #{net_wrapper_forward.2} parent=39 // pred_check_branch
        %203 = sbr.rel (%p201) target = $region44
      $region43: #{net_wrapper_forward.2} parent=39 // pred_region
        %s204 = smul.u32 2, %s18
        %p205 = scmp.lt.s32.totalorder %s204, 3
        %s206 = scalar_select %p205, %s204, 3
        %s207 = smul.addr %s206, 8
        %s208 = scalar_lea.vmem %s1, %s207
      $region44: #{net_wrapper_forward.2} parent=39 // pred_fallthru
        _
    $region40: #{net_wrapper_forward.2} parent=5 // pred_fallthru
      _
  $region6: #{net_wrapper_forward.2} parent=0 // loop_footer
    %s11 = sadd.s32 1, %s7
  $region7: #{net_wrapper_forward.2} parent=0 // loop_footer_branch
    %6 = sbr.rel target = $region3
  $region8: #{net_wrapper_forward.2} parent=0 // loop_exit
    _

// kernel: net_wrapper_forward.3
$region0: #{net_wrapper_forward.3}
  #allocation0 [shape = 'u32[]', space=smem, size = 0x4, offset = 0x4, fixed_abs, tag = 'smem constant byte address 0x4 - core index']
  #allocation1 [shape = 'u32[144,128]{1,0:T(1,128)}', space=vmem, size = 0x12000, scoped, tag = 'internal scratch']
  %s0 = inlined_call_operand.vmem [shape: f32[8,128], index: 0, kind: input, shape index: {}]
  %s1 = inlined_call_operand.vmem [shape: f32[128,128], index: 1, kind: input, shape index: {}]
  %s2 = inlined_call_operand.vmem [shape: f32[1,128], index: 2, kind: input, shape index: {}]
  %s3 = inlined_call_operand.vmem [shape: f32[128,128], index: 3, kind: input, shape index: {}]
  %s4 = inlined_call_operand.vmem [shape: f32[1,128], index: 4, kind: input, shape index: {}]
  %s5 = inlined_call_operand.vmem [shape: f32[1,128], index: 5, kind: input, shape index: {}]
  %s6 = inlined_call_operand.vmem [shape: f32[1,128], index: 6, kind: input, shape index: {}]
  %s7 = inlined_call_operand.vmem [shape: f32[128,128], index: 7, kind: input, shape index: {}]
  %s8 = inlined_call_operand.vmem [shape: f32[1,128], index: 8, kind: input, shape index: {}]
  %s9 = inlined_call_operand.hbm [shape: f32[8,128], index: 9, kind: output, shape index: {}]
  %s10 = sld [smem:[#allocation0]]
  $region46: #{net_wrapper_forward.3} parent=0
    _
  %s12 = ssub.s32 1, %s10
  %s13 = scalar_select 0, %s12, %s10
  $region1: #{net_wrapper_forward.3} parent=0
    #allocation2 [shape = 'u8[4096]{0}', space=vmem, size = 0x1000, scoped, tag = 'output window, operand 0, single buffered']
    #allocation3 [shape = 's32[1]{0}', space=sflag, size = 0x4, scoped, tag = 'scoped memory for net_wrapper_forward.3']
    %14 = vsyncpa [#allocation3], 0
    // Predicated region
    $region2: #{net_wrapper_forward.3} parent=1 // pred_check
      _
    $region3: #{net_wrapper_forward.3} parent=1 // pred_check_branch
      %16 = sbr.rel (0) target = $region5
    $region4: #{net_wrapper_forward.3} parent=1 // pred_region
      _
    $region5: #{net_wrapper_forward.3} parent=1 // pred_fallthru
      _
    // Predicated region
    $region6: #{net_wrapper_forward.3} parent=1 // pred_check
      _
    $region7: #{net_wrapper_forward.3} parent=1 // pred_check_branch
      %18 = sbr.rel (0) target = $region9
    $region8: #{net_wrapper_forward.3} parent=1 // pred_region
      _
    $region9: #{net_wrapper_forward.3} parent=1 // pred_fallthru
      _
    // Predicated region
    $region10: #{net_wrapper_forward.3} parent=1 // pred_check
      _
    $region11: #{net_wrapper_forward.3} parent=1 // pred_check_branch
      %20 = sbr.rel (0) target = $region13
    $region12: #{net_wrapper_forward.3} parent=1 // pred_region
      _
    $region13: #{net_wrapper_forward.3} parent=1 // pred_fallthru
      _
    // Predicated region
    $region14: #{net_wrapper_forward.3} parent=1 // pred_check
      _
    $region15: #{net_wrapper_forward.3} parent=1 // pred_check_branch
      %22 = sbr.rel (0) target = $region17
    $region16: #{net_wrapper_forward.3} parent=1 // pred_region
      _
    $region17: #{net_wrapper_forward.3} parent=1 // pred_fallthru
      _
    // Predicated region
    $region18: #{net_wrapper_forward.3} parent=1 // pred_check
      _
    $region19: #{net_wrapper_forward.3} parent=1 // pred_check_branch
      %24 = sbr.rel (0) target = $region21
    $region20: #{net_wrapper_forward.3} parent=1 // pred_region
      _
    $region21: #{net_wrapper_forward.3} parent=1 // pred_fallthru
      _
    // Predicated region
    $region22: #{net_wrapper_forward.3} parent=1 // pred_check
      _
    $region23: #{net_wrapper_forward.3} parent=1 // pred_check_branch
      %26 = sbr.rel (0) target = $region25
    $region24: #{net_wrapper_forward.3} parent=1 // pred_region
      _
    $region25: #{net_wrapper_forward.3} parent=1 // pred_fallthru
      _
    // Predicated region
    $region26: #{net_wrapper_forward.3} parent=1 // pred_check
      _
    $region27: #{net_wrapper_forward.3} parent=1 // pred_check_branch
      %28 = sbr.rel (0) target = $region29
    $region28: #{net_wrapper_forward.3} parent=1 // pred_region
      _
    $region29: #{net_wrapper_forward.3} parent=1 // pred_fallthru
      _
    // Predicated region
    $region30: #{net_wrapper_forward.3} parent=1 // pred_check
      _
    $region31: #{net_wrapper_forward.3} parent=1 // pred_check_branch
      %30 = sbr.rel (0) target = $region33
    $region32: #{net_wrapper_forward.3} parent=1 // pred_region
      _
    $region33: #{net_wrapper_forward.3} parent=1 // pred_fallthru
      _
    // Predicated region
    $region34: #{net_wrapper_forward.3} parent=1 // pred_check
      _
    $region35: #{net_wrapper_forward.3} parent=1 // pred_check_branch
      %32 = sbr.rel (0) target = $region37
    $region36: #{net_wrapper_forward.3} parent=1 // pred_region
      _
    $region37: #{net_wrapper_forward.3} parent=1 // pred_fallthru
      _
    %v33 = vld [vmem:[%s0] sm:$0xff]
    %v34 = vld [vmem:[%s1] sm:$0xff]
    %v35 = vld [vmem:[%s1 + $0x8] sm:$0xff]
    %v36 = vld [vmem:[%s1 + $0x10] sm:$0xff]
    %v37 = vld [vmem:[%s1 + $0x18] sm:$0xff]
    %v38 = vld [vmem:[%s1 + $0x20] sm:$0xff]
    %v39 = vld [vmem:[%s1 + $0x28] sm:$0xff]
    %v40 = vld [vmem:[%s1 + $0x30] sm:$0xff]
    %v41 = vld [vmem:[%s1 + $0x38] sm:$0xff]
    %v42 = vld [vmem:[%s1 + $0x40] sm:$0xff]
    %v43 = vld [vmem:[%s1 + $0x48] sm:$0xff]
    %v44 = vld [vmem:[%s1 + $0x50] sm:$0xff]
    %v45 = vld [vmem:[%s1 + $0x58] sm:$0xff]
    %v46 = vld [vmem:[%s1 + $0x60] sm:$0xff]
    %v47 = vld [vmem:[%s1 + $0x68] sm:$0xff]
    %v48 = vld [vmem:[%s1 + $0x70] sm:$0xff]
    %v49 = vld [vmem:[%s1 + $0x78] sm:$0xff]
    %v50 = vld [vmem:[%s2] sm:$0x1]
    %v52 = vlaneseq
    %v53 = vshrl.u32 %v52, 7
    %v54 = vsub.s32 0, %v53
    %v55 = vrot.slane %v50, %v54
    %57 = vmatprep.subr.mxu0 0.0
    %58 = vmatpush1.msra.mxu0 %v34
    %59 = vmatprep.subr.mxu0 0.0
    %60 = vmatpush1.msra.mxu0 %v35
    %61 = vmatprep.subr.mxu0 0.0
    %62 = vmatpush1.msra.mxu0 %v36
    %63 = vmatprep.subr.mxu0 0.0
    %64 = vmatpush1.msra.mxu0 %v37
    %65 = vmatprep.subr.mxu0 0.0
    %66 = vmatpush1.msra.mxu0 %v38
    %67 = vmatprep.subr.mxu0 0.0
    %68 = vmatpush1.msra.mxu0 %v39
    %69 = vmatprep.subr.mxu0 0.0
    %70 = vmatpush1.msra.mxu0 %v40
    %71 = vmatprep.subr.mxu0 0.0
    %72 = vmatpush1.msra.mxu0 %v41
    %73 = vmatprep.subr.mxu0 0.0
    %74 = vmatpush1.msra.mxu0 %v42
    %75 = vmatprep.subr.mxu0 0.0
    %76 = vmatpush1.msra.mxu0 %v43
    %77 = vmatprep.subr.mxu0 0.0
    %78 = vmatpush1.msra.mxu0 %v44
    %79 = vmatprep.subr.mxu0 0.0
    %80 = vmatpush1.msra.mxu0 %v45
    %81 = vmatprep.subr.mxu0 0.0
    %82 = vmatpush1.msra.mxu0 %v46
    %83 = vmatprep.subr.mxu0 0.0
    %84 = vmatpush1.msra.mxu0 %v47
    %85 = vmatprep.subr.mxu0 0.0
    %86 = vmatpush1.msra.mxu0 %v48
    %87 = vmatprep.subr.mxu0 0.0
    %88 = vmatpush1.msra.mxu0 %v49
    %89 = vmatprep.subr.mxu0 0.0
    %90 = vmatpush1.msra.mxu0 0.0
    %91 = vmatprep.subr.mxu0 0.0
    %92 = vmatpush1.msra.mxu0 0.0
    %93 = vmatprep.subr.mxu0 0.0
    %94 = vmatpush1.msra.mxu0 0.0
    %95 = vmatprep.subr.mxu0 0.0
    %96 = vmatpush1.msra.mxu0 0.0
    %97 = vmatprep.subr.mxu0 0.0
    %98 = vmatpush1.msra.mxu0 0.0
    %99 = vmatprep.subr.mxu0 0.0
    %100 = vmatpush1.msra.mxu0 0.0
    %101 = vmatprep.subr.mxu0 0.0
    %102 = vmatpush1.msra.mxu0 0.0
    %103 = vmatprep.subr.mxu0 0.0
    %104 = vmatpush1.msra.mxu0 0.0
    %105 = vmatprep.subr.mxu0 0.0
    %106 = vmatpush1.msra.mxu0 0.0
    %107 = vmatprep.subr.mxu0 0.0
    %108 = vmatpush1.msra.mxu0 0.0
    %109 = vmatprep.subr.mxu0 0.0
    %110 = vmatpush1.msra.mxu0 0.0
    %111 = vmatprep.subr.mxu0 0.0
    %112 = vmatpush1.msra.mxu0 0.0
    %113 = vmatprep.subr.mxu0 0.0
    %114 = vmatpush1.msra.mxu0 0.0
    %115 = vmatprep.subr.mxu0 0.0
    %116 = vmatpush1.msra.mxu0 0.0
    %117 = vmatprep.subr.mxu0 0.0
    %118 = vmatpush1.msra.mxu0 0.0
    %119 = vmatprep.subr.mxu0 0.0
    %120 = vmatpush1.msra.mxu0 0.0
    %121 = vmatprep.mubr.f32.mxu0 0.0
    %122 = vmatmul.mubr.f32.gmra.mrb[0].mxu0 %v33
    %v123 = vpop.f32.mrb[0].mxu0
    %v124 = vadd.f32 %v55, %v123
    %v125 = vpop.f32.mrb[0].mxu0
    %126 = vdwg.mxu0
    %v127 = vmax.f32 %v124, 0.0
    %v128 = vld [vmem:[%s3] sm:$0xff]
    %v129 = vld [vmem:[%s3 + $0x8] sm:$0xff]
    %v130 = vld [vmem:[%s3 + $0x10] sm:$0xff]
    %v131 = vld [vmem:[%s3 + $0x18] sm:$0xff]
    %v132 = vld [vmem:[%s3 + $0x20] sm:$0xff]
    %v133 = vld [vmem:[%s3 + $0x28] sm:$0xff]
    %v134 = vld [vmem:[%s3 + $0x30] sm:$0xff]
    %v135 = vld [vmem:[%s3 + $0x38] sm:$0xff]
    %v136 = vld [vmem:[%s3 + $0x40] sm:$0xff]
    %v137 = vld [vmem:[%s3 + $0x48] sm:$0xff]
    %v138 = vld [vmem:[%s3 + $0x50] sm:$0xff]
    %v139 = vld [vmem:[%s3 + $0x58] sm:$0xff]
    %v140 = vld [vmem:[%s3 + $0x60] sm:$0xff]
    %v141 = vld [vmem:[%s3 + $0x68] sm:$0xff]
    %v142 = vld [vmem:[%s3 + $0x70] sm:$0xff]
    %v143 = vld [vmem:[%s3 + $0x78] sm:$0xff]
    %v144 = vld [vmem:[%s4] sm:$0x1]
    %v146 = vlaneseq
    %v147 = vshrl.u32 %v146, 7
    %v148 = vsub.s32 0, %v147
    %v149 = vrot.slane %v144, %v148
    %151 = vmatprep.subr.mxu0 0.0
    %152 = vmatpush1.msra.mxu0 %v128
    %153 = vmatprep.subr.mxu0 0.0
    %154 = vmatpush1.msra.mxu0 %v129
    %155 = vmatprep.subr.mxu0 0.0
    %156 = vmatpush1.msra.mxu0 %v130
    %157 = vmatprep.subr.mxu0 0.0
    %158 = vmatpush1.msra.mxu0 %v131
    %159 = vmatprep.subr.mxu0 0.0
    %160 = vmatpush1.msra.mxu0 %v132
    %161 = vmatprep.subr.mxu0 0.0
    %162 = vmatpush1.msra.mxu0 %v133
    %163 = vmatprep.subr.mxu0 0.0
    %164 = vmatpush1.msra.mxu0 %v134
    %165 = vmatprep.subr.mxu0 0.0
    %166 = vmatpush1.msra.mxu0 %v135
    %167 = vmatprep.subr.mxu0 0.0
    %168 = vmatpush1.msra.mxu0 %v136
    %169 = vmatprep.subr.mxu0 0.0
    %170 = vmatpush1.msra.mxu0 %v137
    %171 = vmatprep.subr.mxu0 0.0
    %172 = vmatpush1.msra.mxu0 %v138
    %173 = vmatprep.subr.mxu0 0.0
    %174 = vmatpush1.msra.mxu0 %v139
    %175 = vmatprep.subr.mxu0 0.0
    %176 = vmatpush1.msra.mxu0 %v140
    %177 = vmatprep.subr.mxu0 0.0
    %178 = vmatpush1.msra.mxu0 %v141
    %179 = vmatprep.subr.mxu0 0.0
    %180 = vmatpush1.msra.mxu0 %v142
    %181 = vmatprep.subr.mxu0 0.0
    %182 = vmatpush1.msra.mxu0 %v143
    %183 = vmatprep.subr.mxu0 0.0
    %184 = vmatpush1.msra.mxu0 0.0
    %185 = vmatprep.subr.mxu0 0.0
    %186 = vmatpush1.msra.mxu0 0.0
    %187 = vmatprep.subr.mxu0 0.0
    %188 = vmatpush1.msra.mxu0 0.0
    %189 = vmatprep.subr.mxu0 0.0
    %190 = vmatpush1.msra.mxu0 0.0
    %191 = vmatprep.subr.mxu0 0.0
    %192 = vmatpush1.msra.mxu0 0.0
    %193 = vmatprep.subr.mxu0 0.0
    %194 = vmatpush1.msra.mxu0 0.0
    %195 = vmatprep.subr.mxu0 0.0
    %196 = vmatpush1.msra.mxu0 0.0
    %197 = vmatprep.subr.mxu0 0.0
    %198 = vmatpush1.msra.mxu0 0.0
    %199 = vmatprep.subr.mxu0 0.0
    %200 = vmatpush1.msra.mxu0 0.0
    %201 = vmatprep.subr.mxu0 0.0
    %202 = vmatpush1.msra.mxu0 0.0
    %203 = vmatprep.subr.mxu0 0.0
    %204 = vmatpush1.msra.mxu0 0.0
    %205 = vmatprep.subr.mxu0 0.0
    %206 = vmatpush1.msra.mxu0 0.0
    %207 = vmatprep.subr.mxu0 0.0
    %208 = vmatpush1.msra.mxu0 0.0
    %209 = vmatprep.subr.mxu0 0.0
    %210 = vmatpush1.msra.mxu0 0.0
    %211 = vmatprep.subr.mxu0 0.0
    %212 = vmatpush1.msra.mxu0 0.0
    %213 = vmatprep.subr.mxu0 0.0
    %214 = vmatpush1.msra.mxu0 0.0
    %215 = vmatprep.mubr.f32.mxu0 0.0
    %216 = vmatmul.mubr.f32.gmra.mrb[0].mxu0 %v127
    %v217 = vpop.f32.mrb[0].mxu0
    %v218 = vadd.f32 %v149, %v217
    %v219 = vpop.f32.mrb[0].mxu0
    %220 = vdwg.mxu0
    %v221 = vrot.slane %v218, 4
    %v222 = vadd.f32 %v218, %v221
    %v223 = vrot.slane %v222, 2
    %v224 = vadd.f32 %v222, %v223
    %v225 = vrot.slane %v224, 1
    %v226 = vadd.f32 %v224, %v225
    %v227 = vrcp.pop 8.0
    %v228 = vmul.f32 %v226, %v227
    %v229 = vsub.f32 %v218, %v228
    %v230 = vmul.f32 %v229, %v229
    %v231 = vrot.slane %v230, 4
    %v232 = vadd.f32 %v230, %v231
    %v233 = vrot.slane %v232, 2
    %v234 = vadd.f32 %v232, %v233
    %v235 = vrot.slane %v234, 1
    %v236 = vadd.f32 %v234, %v235
    %v237 = vmul.f32 %v236, %v227
    %v238 = vadd.f32 %v237, 1e-05
    %v239 = vrsqrt.pop %v238
    %v240 = vmul.f32 %v229, %v239
    %v241 = vld [vmem:[%s5] sm:$0x1]
    %v243 = vlaneseq
    %v244 = vshrl.u32 %v243, 7
    %v245 = vsub.s32 0, %v244
    %v246 = vrot.slane %v241, %v245
    %v248 = vmul.f32 %v240, %v246
    %v249 = vld [vmem:[%s6] sm:$0x1]
    %v251 = vlaneseq
    %v252 = vshrl.u32 %v251, 7
    %v253 = vsub.s32 0, %v252
    %v254 = vrot.slane %v249, %v253
    %v256 = vadd.f32 %v248, %v254
    %v257 = vmax.f32 %v256, 0.0
    %v258 = vld [vmem:[%s7] sm:$0xff]
    %v259 = vld [vmem:[%s7 + $0x8] sm:$0xff]
    %v260 = vld [vmem:[%s7 + $0x10] sm:$0xff]
    %v261 = vld [vmem:[%s7 + $0x18] sm:$0xff]
    %v262 = vld [vmem:[%s7 + $0x20] sm:$0xff]
    %v263 = vld [vmem:[%s7 + $0x28] sm:$0xff]
    %v264 = vld [vmem:[%s7 + $0x30] sm:$0xff]
    %v265 = vld [vmem:[%s7 + $0x38] sm:$0xff]
    %v266 = vld [vmem:[%s7 + $0x40] sm:$0xff]
    %v267 = vld [vmem:[%s7 + $0x48] sm:$0xff]
    %v268 = vld [vmem:[%s7 + $0x50] sm:$0xff]
    %v269 = vld [vmem:[%s7 + $0x58] sm:$0xff]
    %v270 = vld [vmem:[%s7 + $0x60] sm:$0xff]
    %v271 = vld [vmem:[%s7 + $0x68] sm:$0xff]
    %v272 = vld [vmem:[%s7 + $0x70] sm:$0xff]
    %v273 = vld [vmem:[%s7 + $0x78] sm:$0xff]
    %v274 = vld [vmem:[%s8] sm:$0x1]
    %v276 = vlaneseq
    %v277 = vshrl.u32 %v276, 7
    %v278 = vsub.s32 0, %v277
    %v279 = vrot.slane %v274, %v278
    %281 = vmatprep.subr.mxu0 0.0
    %282 = vmatpush1.msra.mxu0 %v258
    %283 = vmatprep.subr.mxu0 0.0
    %284 = vmatpush1.msra.mxu0 %v259
    %285 = vmatprep.subr.mxu0 0.0
    %286 = vmatpush1.msra.mxu0 %v260
    %287 = vmatprep.subr.mxu0 0.0
    %288 = vmatpush1.msra.mxu0 %v261
    %289 = vmatprep.subr.mxu0 0.0
    %290 = vmatpush1.msra.mxu0 %v262
    %291 = vmatprep.subr.mxu0 0.0
    %292 = vmatpush1.msra.mxu0 %v263
    %293 = vmatprep.subr.mxu0 0.0
    %294 = vmatpush1.msra.mxu0 %v264
    %295 = vmatprep.subr.mxu0 0.0
    %296 = vmatpush1.msra.mxu0 %v265
    %297 = vmatprep.subr.mxu0 0.0
    %298 = vmatpush1.msra.mxu0 %v266
    %299 = vmatprep.subr.mxu0 0.0
    %300 = vmatpush1.msra.mxu0 %v267
    %301 = vmatprep.subr.mxu0 0.0
    %302 = vmatpush1.msra.mxu0 %v268
    %303 = vmatprep.subr.mxu0 0.0
    %304 = vmatpush1.msra.mxu0 %v269
    %305 = vmatprep.subr.mxu0 0.0
    %306 = vmatpush1.msra.mxu0 %v270
    %307 = vmatprep.subr.mxu0 0.0
    %308 = vmatpush1.msra.mxu0 %v271
    %309 = vmatprep.subr.mxu0 0.0
    %310 = vmatpush1.msra.mxu0 %v272
    %311 = vmatprep.subr.mxu0 0.0
    %312 = vmatpush1.msra.mxu0 %v273
    %313 = vmatprep.subr.mxu0 0.0
    %314 = vmatpush1.msra.mxu0 0.0
    %315 = vmatprep.subr.mxu0 0.0
    %316 = vmatpush1.msra.mxu0 0.0
    %317 = vmatprep.subr.mxu0 0.0
    %318 = vmatpush1.msra.mxu0 0.0
    %319 = vmatprep.subr.mxu0 0.0
    %320 = vmatpush1.msra.mxu0 0.0
    %321 = vmatprep.subr.mxu0 0.0
    %322 = vmatpush1.msra.mxu0 0.0
    %323 = vmatprep.subr.mxu0 0.0
    %324 = vmatpush1.msra.mxu0 0.0
    %325 = vmatprep.subr.mxu0 0.0
    %326 = vmatpush1.msra.mxu0 0.0
    %327 = vmatprep.subr.mxu0 0.0
    %328 = vmatpush1.msra.mxu0 0.0
    %329 = vmatprep.subr.mxu0 0.0
    %330 = vmatpush1.msra.mxu0 0.0
    %331 = vmatprep.subr.mxu0 0.0
    %332 = vmatpush1.msra.mxu0 0.0
    %333 = vmatprep.subr.mxu0 0.0
    %334 = vmatpush1.msra.mxu0 0.0
    %335 = vmatprep.subr.mxu0 0.0
    %336 = vmatpush1.msra.mxu0 0.0
    %337 = vmatprep.subr.mxu0 0.0
    %338 = vmatpush1.msra.mxu0 0.0
    %339 = vmatprep.subr.mxu0 0.0
    %340 = vmatpush1.msra.mxu0 0.0
    %341 = vmatprep.subr.mxu0 0.0
    %342 = vmatpush1.msra.mxu0 0.0
    %343 = vmatprep.subr.mxu0 0.0
    %344 = vmatpush1.msra.mxu0 0.0
    %345 = vmatprep.mubr.f32.mxu0 0.0
    %346 = vmatmul.mubr.f32.gmra.mrb[0].mxu0 %v257
    %v347 = vpop.f32.mrb[0].mxu0
    %v348 = vadd.f32 %v279, %v347
    %v349 = vpop.f32.mrb[0].mxu0
    %350 = vdwg.mxu0
    %351 = vst [vmem:[#allocation2] sm:$0xff] %v348
    // Predicated region
    $region38: #{net_wrapper_forward.3} parent=1 // pred_check
      _
    $region39: #{net_wrapper_forward.3} parent=1 // pred_check_branch
      %353 = sbr.rel (0) target = $region41
    $region40: #{net_wrapper_forward.3} parent=1 // pred_region
      %s355 = ssub.s32 128, 128
      %356 = vsyncadd [#allocation3], %s355
      %s358 = sshll.u32 [#allocation2], 4
      %s359 = int_to_ptr.vmem [resolvable:$true] %s358
      %361 = dma.vmem_to_hbm [thread:$0]  %s359, 128, %s9, [#allocation3]
    $region41: #{net_wrapper_forward.3} parent=1 // pred_fallthru
      _
    // Predicated region
    $region42: #{net_wrapper_forward.3} parent=1 // pred_check
      _
    $region43: #{net_wrapper_forward.3} parent=1 // pred_check_branch
      %363 = sbr.rel (0) target = $region45
    $region44: #{net_wrapper_forward.3} parent=1 // pred_region
      %364 = dma.done [#allocation3], 128
    $region45: #{net_wrapper_forward.3} parent=1 // pred_fallthru
      _
    %365 = vsyncpa [#allocation3], 1

</llo_original>
